<compile_context>
chip_gen: v7x
topology: tpu7x:2x2x1
jax: 0.10.0
libtpu: 0.0.40
codegen_flags: <defaults>
</compile_context>

<pallas_src>
import numpy as np
import jax
import jax.numpy as jnp
from jax.experimental import pallas as pl
from jax.experimental.pallas import tpu as pltpu

# ---- module hyper-parameters (mirrors LogMelSpectrogram.__init__ defaults) ----
SAMPLE_RATE = 16000
N_FFT = 400
N_MELS = 80
WIN_LENGTH = int(round(SAMPLE_RATE / 1000.0 * 25))   # 400 samples
HOP_LENGTH = int(round(SAMPLE_RATE / 1000.0 * 10))   # 160 samples
LOG_OFFSET = 1e-6
N_FREQS = N_FFT // 2 + 1                             # 201 one-sided rfft bins

# ---- TPU-friendly padded dimensions ----
N_PAD = 256                      # freq bins padded to a lane multiple (201 -> 256)
M_PAD = 128                      # mel bins padded to a lane multiple  (80 -> 128)
K_CHUNKS = 3                     # a 400-sample frame spans 3 hop chunks (160 + 160 + 80)
MAX_TILE_FRAMES = 512            # frame-tile rows (multiple of 8); keeps VMEM use ~4 MB


# ---------------- deterministic parameter construction (no checkpoints) ----------------
def _hz_to_mel_htk(f):
    return 2595.0 * np.log10(1.0 + f / 700.0)


def _mel_to_hz_htk(m):
    return 700.0 * (10.0 ** (m / 2595.0) - 1.0)


def make_mel_fbank():
    """torchaudio.functional.melscale_fbanks(n_freqs, 0, sr//2, n_mels, sr, norm=None, 'htk')."""
    all_freqs = np.linspace(0.0, SAMPLE_RATE // 2, N_FREQS)
    m_min = _hz_to_mel_htk(0.0)
    m_max = _hz_to_mel_htk(float(SAMPLE_RATE // 2))
    m_pts = np.linspace(m_min, m_max, N_MELS + 2)
    f_pts = _mel_to_hz_htk(m_pts)
    f_diff = f_pts[1:] - f_pts[:-1]
    slopes = f_pts[None, :] - all_freqs[:, None]          # (n_freqs, n_mels + 2)
    down_slopes = (-slopes[:, :-2]) / f_diff[:-1]
    up_slopes = slopes[:, 2:] / f_diff[1:]
    fb = np.maximum(0.0, np.minimum(down_slopes, up_slopes))
    return fb.astype(np.float32)                          # (201, 80)


def make_windowed_dft():
    """Real/imag rfft matrices with the periodic Hann window folded in."""
    n = np.arange(N_FFT)
    k = np.arange(N_FREQS)
    ang = 2.0 * np.pi * np.outer(n, k) / N_FFT            # (n_fft, n_freqs)
    window = 0.5 - 0.5 * np.cos(2.0 * np.pi * np.arange(WIN_LENGTH) / WIN_LENGTH)
    cosw = (np.cos(ang) * window[:, None]).astype(np.float32)
    sinw = (-np.sin(ang) * window[:, None]).astype(np.float32)
    return cosw, sinw                                      # each (400, 201)


def make_packed_weights():
    """(480, 512) packed [cos | sin] DFT weights and (256, 128) zero-padded mel fbank."""
    cosw, sinw = make_windowed_dft()
    w = np.zeros((K_CHUNKS * HOP_LENGTH, 2 * N_PAD), np.float32)   # (480, 512), rows 400:480 zero
    w[:N_FFT, :N_FREQS] = cosw
    w[:N_FFT, N_PAD:N_PAD + N_FREQS] = sinw
    mel = np.zeros((N_PAD, M_PAD), np.float32)                     # (256, 128)
    mel[:N_FREQS, :N_MELS] = make_mel_fbank()
    return w, mel


# ------------------------------------ Pallas kernel ------------------------------------
def logmel_kernel(chunk_ref, tail_ref, w_ref, mel_ref, out_ref, stage_ref):
    # chunk_ref: (TF, 160)    hop chunks c .. c+TF-1 for this frame tile
    # tail_ref : (8, 160)     hop chunks c+TF .. c+TF+7 (only rows 0..1 are actually read)
    # w_ref    : (480, 512)   window-folded [cos | sin] DFT weights (rows 400:480 zero)
    # mel_ref  : (256, 128)   zero-padded mel filterbank
    # out_ref  : (TF, 128)    log-mel (first 80 lanes valid)
    # stage_ref: (TF+8, 160)  VMEM staging so frame i can read chunks i, i+1, i+2
    tf = out_ref.shape[0]
    stage_ref[0:tf, :] = chunk_ref[...]
    stage_ref[tf:tf + 8, :] = tail_ref[...]               # full-tile unmasked store

    # frame_i = [chunk_i ; chunk_{i+1} ; chunk_{i+2}[:80]] ; zero weight rows absorb the tail.
    y = jnp.dot(stage_ref[0:tf, :], w_ref[0:HOP_LENGTH, :],
                preferred_element_type=jnp.float32)
    y = y + jnp.dot(stage_ref[1:tf + 1, :], w_ref[HOP_LENGTH:2 * HOP_LENGTH, :],
                    preferred_element_type=jnp.float32)
    y = y + jnp.dot(stage_ref[2:tf + 2, :], w_ref[2 * HOP_LENGTH:3 * HOP_LENGTH, :],
                    preferred_element_type=jnp.float32)

    re = y[:, :N_PAD]                                      # lane-aligned 256-wide halves
    im = y[:, N_PAD:]
    power = re * re + im * im                              # |STFT|^2 (power=2.0 default)
    mel = jnp.dot(power, mel_ref[...], preferred_element_type=jnp.float32)
    out_ref[...] = jnp.log(mel + LOG_OFFSET)


def _round_up(x, m):
    return (x + m - 1) // m * m


@jax.jit
def log_mel_spectrogram(inputs: jax.Array) -> jax.Array:
    """inputs: (B, samples) float32  ->  (B, n_frames, n_mels) float32."""
    B, S = inputs.shape
    pad = N_FFT // 2                                        # center=True, reflect padding
    if S <= pad:
        raise ValueError("input must be longer than n_fft // 2 samples for reflect padding")
    n_frames = 1 + (S + 2 * pad - N_FFT) // HOP_LENGTH

    tf = min(MAX_TILE_FRAMES, _round_up(n_frames, 8))       # frame-tile rows (multiple of 8)
    n_tiles = -(-n_frames // tf)
    n_chunks = n_tiles * tf + 8                             # +8 keeps the tail block in-bounds
    total = n_chunks * HOP_LENGTH

    x = jnp.pad(inputs, ((0, 0), (pad, pad)), mode="reflect")
    x = jnp.pad(x, ((0, 0), (0, total - (S + 2 * pad))))    # zero tail; real frames never read it
    chunks = x.reshape(B, n_chunks, HOP_LENGTH)             # (B, n_chunks, 160)

    w_np, mel_np = make_packed_weights()
    w = jnp.asarray(w_np)
    mel = jnp.asarray(mel_np)

    out = pl.pallas_call(
        logmel_kernel,
        out_shape=jax.ShapeDtypeStruct((B, n_tiles * tf, M_PAD), jnp.float32),
        grid_spec=pltpu.PrefetchScalarGridSpec(
            num_scalar_prefetch=0,
            grid=(B, n_tiles),
            in_specs=[
                # main chunk tile for this frame tile
                pl.BlockSpec((None, tf, HOP_LENGTH), lambda b, t: (b, t, 0)),
                # next 8 chunks (first two are the overlap tail of the last frames)
                pl.BlockSpec((None, 8, HOP_LENGTH),
                             lambda b, t: (b, (t + 1) * (tf // 8), 0)),
                # constant weights (constant index map -> DMA'd once, resident across grid)
                pl.BlockSpec((K_CHUNKS * HOP_LENGTH, 2 * N_PAD), lambda b, t: (0, 0)),
                pl.BlockSpec((N_PAD, M_PAD), lambda b, t: (0, 0)),
            ],
            out_specs=pl.BlockSpec((None, tf, M_PAD), lambda b, t: (b, t, 0)),
            scratch_shapes=[pltpu.VMEM((tf + 8, HOP_LENGTH), jnp.float32)],
        ),
        compiler_params=pltpu.CompilerParams(
            dimension_semantics=("parallel", "parallel"),
            vmem_limit_bytes=32 * 1024 * 1024,
        ),
    )(chunks, chunks, w, mel)

    return out[:, :n_frames, :N_MELS]


# ------------------------------- pure-JAX reference (check) ----------------------------
def reference_logmel(inputs: jax.Array) -> jax.Array:
    B, S = inputs.shape
    pad = N_FFT // 2
    x = jnp.pad(inputs, ((0, 0), (pad, pad)), mode="reflect")
    n_frames = 1 + (S + 2 * pad - N_FFT) // HOP_LENGTH
    idx = np.arange(n_frames)[:, None] * HOP_LENGTH + np.arange(N_FFT)[None, :]
    frames = x[:, idx]                                      # (B, n_frames, 400)
    cosw, sinw = make_windowed_dft()
    hi = jax.lax.Precision.HIGHEST
    re = jnp.einsum("btn,nk->btk", frames, jnp.asarray(cosw), precision=hi)
    im = jnp.einsum("btn,nk->btk", frames, jnp.asarray(sinw), precision=hi)
    power = re * re + im * im
    mel = jnp.einsum("btk,km->btm", power, jnp.asarray(make_mel_fbank()), precision=hi)
    return jnp.log(mel + LOG_OFFSET)


if __name__ == "__main__":
    key = jax.random.PRNGKey(0)
    B, S = 2, 1600                      # 0.1 s of 16 kHz audio -> 11 frames
    inputs = jax.random.normal(key, (B, S), dtype=jnp.float32)

    out = log_mel_spectrogram(inputs)
    jax.block_until_ready(out)

    n_frames = 1 + S // HOP_LENGTH
    assert out.shape == (B, n_frames, N_MELS), out.shape
    assert out.dtype == jnp.float32

    ref = reference_logmel(inputs)
    max_err = float(jnp.max(jnp.abs(out - ref)))
    assert max_err < 5e-2, f"max |kernel - reference| = {max_err}"
    print("KERNEL_OK")
</pallas_src>

<mosaic_0001>
module attributes {stable_mosaic.version = 11 : i64} {
  func.func @logmel_kernel(%arg0: i32, %arg1: i32, %arg2: memref<1x16x160xf32, #tpu.memory_space<vmem>>, %arg3: memref<1x8x160xf32, #tpu.memory_space<vmem>>, %arg4: memref<480x512xf32, #tpu.memory_space<vmem>>, %arg5: memref<256x128xf32, #tpu.memory_space<vmem>>, %arg6: memref<1x16x128xf32, #tpu.memory_space<vmem>>, %arg7: memref<24x160xf32, #tpu.memory_space<vmem>>) attributes {dimension_semantics = [#tpu.dimension_semantics<parallel>, #tpu.dimension_semantics<parallel>], iteration_bounds = array<i64: 2, 1>, scalar_prefetch = 0 : i64, scratch_operands = 1 : i64, tpu.core_type = #tpu.core_type<tc>, window_params = [{transform_indices = @transform_0, window_bounds = array<i64: 1, 16, 160>}, {transform_indices = @transform_1, window_bounds = array<i64: 1, 8, 160>}, {pipeline_mode = #tpu.pipeline_mode<synchronous>, transform_indices = @transform_2, window_bounds = array<i64: 480, 512>}, {pipeline_mode = #tpu.pipeline_mode<synchronous>, transform_indices = @transform_3, window_bounds = array<i64: 256, 128>}, {transform_indices = @transform_4, window_bounds = array<i64: 1, 16, 128>}]} {
    %c0 = arith.constant 0 : index
    %c0_0 = arith.constant 0 : index
    %c0_1 = arith.constant 0 : index
    %0 = vector.load %arg2[%c0, %c0_0, %c0_1] : memref<1x16x160xf32, #tpu.memory_space<vmem>>, vector<1x16x160xf32>
    %1 = vector.shape_cast %0 : vector<1x16x160xf32> to vector<16x160xf32>
    %c0_2 = arith.constant 0 : index
    %c0_3 = arith.constant 0 : index
    %2 = vector.load %arg7[%c0_2, %c0_3] : memref<24x160xf32, #tpu.memory_space<vmem>>, vector<16x160xf32>
    tpu.vector_store %arg7[%c0_2, %c0_3], %1 {strides = array<i32>} : memref<24x160xf32, #tpu.memory_space<vmem>>, vector<16x160xf32>,
    %c0_4 = arith.constant 0 : index
    %c0_5 = arith.constant 0 : index
    %c0_6 = arith.constant 0 : index
    %3 = vector.load %arg3[%c0_4, %c0_5, %c0_6] : memref<1x8x160xf32, #tpu.memory_space<vmem>>, vector<1x8x160xf32>
    %4 = vector.shape_cast %3 : vector<1x8x160xf32> to vector<8x160xf32>
    %c16 = arith.constant 16 : index
    %c0_7 = arith.constant 0 : index
    %5 = vector.load %arg7[%c16, %c0_7] : memref<24x160xf32, #tpu.memory_space<vmem>>, vector<8x160xf32>
    tpu.vector_store %arg7[%c16, %c0_7], %4 {strides = array<i32>} : memref<24x160xf32, #tpu.memory_space<vmem>>, vector<8x160xf32>,
    %c0_8 = arith.constant 0 : index
    %c0_9 = arith.constant 0 : index
    %6 = vector.load %arg7[%c0_8, %c0_9] : memref<24x160xf32, #tpu.memory_space<vmem>>, vector<16x160xf32>
    %c0_10 = arith.constant 0 : index
    %c0_11 = arith.constant 0 : index
    %7 = vector.load %arg4[%c0_10, %c0_11] : memref<480x512xf32, #tpu.memory_space<vmem>>, vector<160x512xf32>
    %cst = arith.constant dense<0.000000e+00> : vector<16x512xf32>
    %8 = tpu.matmul %6, %7, %cst {dimension_numbers = #tpu.dot_dimension_numbers<[1], [0], [0], [1], [0, 0, 1, 1], [], []>} : vector<16x160xf32>, vector<160x512xf32>, vector<16x512xf32> -> vector<16x512xf32>
    %c1 = arith.constant 1 : index
    %c0_12 = arith.constant 0 : index
    %9 = vector.load %arg7[%c1, %c0_12] : memref<24x160xf32, #tpu.memory_space<vmem>>, vector<16x160xf32>
    %c160 = arith.constant 160 : index
    %c0_13 = arith.constant 0 : index
    %10 = vector.load %arg4[%c160, %c0_13] : memref<480x512xf32, #tpu.memory_space<vmem>>, vector<160x512xf32>
    %cst_14 = arith.constant dense<0.000000e+00> : vector<16x512xf32>
    %11 = tpu.matmul %9, %10, %cst_14 {dimension_numbers = #tpu.dot_dimension_numbers<[1], [0], [0], [1], [0, 0, 1, 1], [], []>} : vector<16x160xf32>, vector<160x512xf32>, vector<16x512xf32> -> vector<16x512xf32>
    %12 = arith.addf %8, %11 : vector<16x512xf32>
    %c2 = arith.constant 2 : index
    %c0_15 = arith.constant 0 : index
    %13 = vector.load %arg7[%c2, %c0_15] : memref<24x160xf32, #tpu.memory_space<vmem>>, vector<16x160xf32>
    %c320 = arith.constant 320 : index
    %c0_16 = arith.constant 0 : index
    %14 = vector.load %arg4[%c320, %c0_16] : memref<480x512xf32, #tpu.memory_space<vmem>>, vector<160x512xf32>
    %cst_17 = arith.constant dense<0.000000e+00> : vector<16x512xf32>
    %15 = tpu.matmul %13, %14, %cst_17 {dimension_numbers = #tpu.dot_dimension_numbers<[1], [0], [0], [1], [0, 0, 1, 1], [], []>} : vector<16x160xf32>, vector<160x512xf32>, vector<16x512xf32> -> vector<16x512xf32>
    %16 = arith.addf %12, %15 : vector<16x512xf32>
    %17 = vector.extract_strided_slice %16 {offsets = [0, 0], sizes = [16, 256], strides = [1, 1]} : vector<16x512xf32> to vector<16x256xf32>
    %18 = vector.extract_strided_slice %16 {offsets = [0, 256], sizes = [16, 256], strides = [1, 1]} : vector<16x512xf32> to vector<16x256xf32>
    %19 = arith.mulf %17, %17 : vector<16x256xf32>
    %20 = arith.mulf %18, %18 : vector<16x256xf32>
    %21 = arith.addf %19, %20 : vector<16x256xf32>
    %c0_18 = arith.constant 0 : index
    %c0_19 = arith.constant 0 : index
    %22 = vector.load %arg5[%c0_18, %c0_19] : memref<256x128xf32, #tpu.memory_space<vmem>>, vector<256x128xf32>
    %cst_20 = arith.constant dense<0.000000e+00> : vector<16x128xf32>
    %23 = tpu.matmul %21, %22, %cst_20 {dimension_numbers = #tpu.dot_dimension_numbers<[1], [0], [0], [1], [0, 0, 1, 1], [], []>} : vector<16x256xf32>, vector<256x128xf32>, vector<16x128xf32> -> vector<16x128xf32>
    %cst_21 = arith.constant 9.99999997E-7 : f32
    %24 = vector.broadcast %cst_21 : f32 to vector<16x128xf32>
    %25 = arith.addf %23, %24 : vector<16x128xf32>
    %26 = math.log %25 : vector<16x128xf32>
    %c0_22 = arith.constant 0 : index
    %c0_23 = arith.constant 0 : index
    %c0_24 = arith.constant 0 : index
    %27 = vector.load %arg6[%c0_22, %c0_23, %c0_24] : memref<1x16x128xf32, #tpu.memory_space<vmem>>, vector<1x16x128xf32>
    %28 = vector.shape_cast %27 : vector<1x16x128xf32> to vector<16x128xf32>
    %29 = vector.shape_cast %26 : vector<16x128xf32> to vector<1x16x128xf32>
    tpu.vector_store %arg6[%c0_22, %c0_23, %c0_24], %29 {strides = array<i32>} : memref<1x16x128xf32, #tpu.memory_space<vmem>>, vector<1x16x128xf32>,
    return
  }
  func.func @transform_0(%arg0: i32, %arg1: i32) -> (i32, i32, i32) {
    %c0_i32 = arith.constant 0 : i32
    %c0_i32_0 = arith.constant 0 : i32
    return %arg0, %arg1, %c0_i32 : i32, i32, i32
  }
  func.func @transform_1(%arg0: i32, %arg1: i32) -> (i32, i32, i32) {
    %c1_i32 = arith.constant 1 : i32
    %0 = arith.addi %arg1, %c1_i32 : i32
    %c2_i32 = arith.constant 2 : i32
    %1 = arith.muli %0, %c2_i32 : i32
    %c0_i32 = arith.constant 0 : i32
    %c0_i32_0 = arith.constant 0 : i32
    return %arg0, %1, %c0_i32 : i32, i32, i32
  }
  func.func @transform_2(%arg0: i32, %arg1: i32) -> (i32, i32) {
    %c0_i32 = arith.constant 0 : i32
    %c0_i32_0 = arith.constant 0 : i32
    %c0_i32_1 = arith.constant 0 : i32
    return %c0_i32, %c0_i32_0 : i32, i32
  }
  func.func @transform_3(%arg0: i32, %arg1: i32) -> (i32, i32) {
    %c0_i32 = arith.constant 0 : i32
    %c0_i32_0 = arith.constant 0 : i32
    %c0_i32_1 = arith.constant 0 : i32
    return %c0_i32, %c0_i32_0 : i32, i32
  }
  func.func @transform_4(%arg0: i32, %arg1: i32) -> (i32, i32, i32) {
    %c0_i32 = arith.constant 0 : i32
    %c0_i32_0 = arith.constant 0 : i32
    return %arg0, %arg1, %c0_i32 : i32, i32, i32
  }
}

</mosaic_0001>

<llo_original>
// kernel: reverse.1
$region0: #{reverse.1}
  %s0 = inlined_call_operand.vmem [shape: f32[2,256], index: 0, kind: input, shape index: {}]
  %s1 = inlined_call_operand.vmem [shape: f32[2,256], index: 1, kind: output, shape index: {}]
  %v2 = vlaneseq
  %v3 = vsub.s32 127, %v2
  %4 = vset.pattern.permute.xlu0 %v3
  $region1: #{reverse.1} parent=0
    #allocation0 [shape = 'u8[4096]{0}', space=vmem, size = 0x1000, scoped, tag = 'operand span for operand 0']
    #allocation1 [shape = 'u8[2048]{0}', space=vmem, size = 0x800, scoped, tag = 'packed  for operand 0']
    #allocation2 [shape = 'u8[4096]{0}', space=vmem, size = 0x1000, scoped, tag = 'operand span for operand 1']
    #allocation3 [shape = 'u8[2048]{0}', space=vmem, size = 0x800, scoped, tag = 'packed  for operand 1']
    loop: start=0, step=1, limit=4
    $region2: #{reverse.1} parent=1 // loop_pre_header
      _
    $region3: #{reverse.1} parent=1 // loop_header
      %s6 = sphi 0, %s10
      %p7 = scmp.ge.s32.totalorder %s6, 4
      %s13 = sphi 0, %s25
      %s14 = sphi 0, %s21
      %s15 = sphi 0, %s13
      %s16 = sphi 0, %s14
      %s17 = sphi 0, %s15
      %s18 = sphi 0, %s16
    $region4: #{reverse.1} parent=1 // loop_header_branch
      %9 = sbr.rel (%p7) target = $region8
    $region5: #{reverse.1} parent=1 // loop_body
      %s11 = ssub.s32 %s6, 1
      %s12 = ssub.s32 %s6, 2
      %s19 = sadd.s32 1, %s14
      %p20 = scmp.ge.s32.totalorder %s19, 2
      %s21 = scalar_select %p20, 0, %s19
      %s22 = sadd.s32 1, %s13
      %s23 = scalar_select %p20, %s22, %s13
      %p24 = scmp.ge.s32.totalorder %s23, 1
      %s25 = scalar_select %p24, 0, %s23
      %p26 = scmp.le.s32.totalorder 1, %s6
      %p27 = scmp.lt.s32.totalorder %s6, 3
      %p28 = pnand %p26, %p27
      %p29 = pneg %p28
      // Predicated region
      $region9: #{reverse.1} parent=5 // pred_check
        _
      $region10: #{reverse.1} parent=5 // pred_check_branch
        %31 = sbr.rel (%p28) target = $region12
      $region11: #{reverse.1} parent=5 // pred_region
        %s32 = ssub.s32 %s6, 1
      $region12: #{reverse.1} parent=5 // pred_fallthru
        _
      %p33 = scmp.lt.s32.totalorder %s6, 2
      // Predicated region
      $region13: #{reverse.1} parent=5 // pred_check
        %p34 = pneg %p33
      $region14: #{reverse.1} parent=5 // pred_check_branch
        %36 = sbr.rel (%p34) target = $region16
      $region15: #{reverse.1} parent=5 // pred_region
        %s37 = sand.u32 %s6, 1
        %s38 = sand.u32 %s6, 1
        %s39 = smul.addr %s38, 2
        %s40 = scalar_lea.vmem [#allocation1], %s39
        %s41 = ssub.s32 1, %s14
        %s42 = smul.addr %s13, 2
        %s43 = sadd.s32 %s41, %s42
        %s44 = smul.addr %s43, 2
        %s45 = scalar_lea.vmem %s0, %s44
        // Predicated region
        $region17: #{reverse.1} parent=15 // pred_check
          _
        $region18: #{reverse.1} parent=15 // pred_check_branch
          %47 = sbr.rel (0) target = $region20
        $region19: #{reverse.1} parent=15 // pred_region
          // Predicated region
          $region21: #{reverse.1} parent=19 // pred_check
            _
          $region22: #{reverse.1} parent=19 // pred_check_branch
            %49 = sbr.rel target = $region24
          $region23: #{reverse.1} parent=19 // pred_region
            // Predicated region
            $region36: #{reverse.1} parent=23 // pred_check
              _
            $region37: #{reverse.1} parent=23 // pred_check_branch
              %64 = sbr.rel (0) target = $region39
            $region38: #{reverse.1} parent=23 // pred_region
              loop: start=0, step=1, limit=1
              $region40: #{reverse.1} parent=38 // loop_pre_header
                _
              $region41: #{reverse.1} parent=38 // loop_header
                %s67 = sphi 0, %s71
                %p68 = scmp.ge.s32.totalorder %s67, 1
                %s72 = sphi %s45, %s45
                %s73 = sphi %s40, %s40
              $region42: #{reverse.1} parent=38 // loop_header_branch
                %70 = sbr.rel (%p68) target = $region46
              $region43: #{reverse.1} parent=38 // loop_body
                %v74 = vld [vmem:[%s72] sm:$0x3]
                %75 = vst [vmem:[%s73] sm:$0x3] %v74
              $region44: #{reverse.1} parent=38 // loop_footer
                %s71 = sadd.s32 1, %s67
              $region45: #{reverse.1} parent=38 // loop_footer_branch
                %66 = sbr.rel target = $region41
              $region46: #{reverse.1} parent=38 // loop_exit
                _
            $region39: #{reverse.1} parent=23 // pred_fallthru
              _
          $region24: #{reverse.1} parent=19 // pred_fallthru
            _
          // Predicated region
          $region25: #{reverse.1} parent=19 // pred_check
            _
          $region26: #{reverse.1} parent=19 // pred_check_branch
            %51 = sbr.rel (0) target = $region28
          $region27: #{reverse.1} parent=19 // pred_region
            loop: start=0, step=1, limit=1
            $region29: #{reverse.1} parent=27 // loop_pre_header
              _
            $region30: #{reverse.1} parent=27 // loop_header
              %s54 = sphi 0, %s58
              %p55 = scmp.ge.s32.totalorder %s54, 1
              %s59 = sphi %s45, %s45
              %s60 = sphi %s40, %s40
            $region31: #{reverse.1} parent=27 // loop_header_branch
              %57 = sbr.rel (%p55) target = $region35
            $region32: #{reverse.1} parent=27 // loop_body
              %v61 = vld [vmem:[%s59] sm:$0x3]
              %62 = vst [vmem:[%s60] sm:$0x3] %v61
            $region33: #{reverse.1} parent=27 // loop_footer
              %s58 = sadd.s32 1, %s54
            $region34: #{reverse.1} parent=27 // loop_footer_branch
              %53 = sbr.rel target = $region30
            $region35: #{reverse.1} parent=27 // loop_exit
              _
          $region28: #{reverse.1} parent=19 // pred_fallthru
            _
        $region20: #{reverse.1} parent=15 // pred_fallthru
          _
        %76 = vnop
      $region16: #{reverse.1} parent=5 // pred_fallthru
        _
      %p77 = scmp.le.s32.totalorder 1, %s6
      %p78 = scmp.lt.s32.totalorder %s6, 3
      %p79 = pnand %p77, %p78
      %p80 = pneg %p79
      // Predicated region
      $region47: #{reverse.1} parent=5 // pred_check
        _
      $region48: #{reverse.1} parent=5 // pred_check_branch
        %82 = sbr.rel (%p79) target = $region50
      $region49: #{reverse.1} parent=5 // pred_region
        %s83 = ssub.s32 %s6, 1
        %s84 = sand.u32 %s11, 1
        %s85 = sand.u32 %s11, 1
        %s86 = smul.addr %s85, 2
        %s87 = scalar_lea.vmem [#allocation1], %s86
        %s88 = sand.u32 %s11, 1
        %s89 = sand.u32 %s11, 1
        %s90 = smul.addr %s89, 2
        %s91 = scalar_lea.vmem [#allocation1], %s90
        %s92 = sand.u32 %s11, 1
        %s93 = sand.u32 %s11, 1
        %s94 = smul.addr %s93, 2
        %s95 = scalar_lea.vmem [#allocation3], %s94
        %s97 = sshllo.u32 0, 2
        %v98 = vld [vmem:[%s91] sm:%s97]
        %99 = vst [vmem:[#allocation0] sm:%s97] %v98
        %s100 = ssub.s32 1, %s16
        %v101 = vld [vmem:[#allocation0] sm:$0xff]
        %102 = vperm.xlu0 %4, %v101
        %v103 = vpop.permute.xlu0 %102
        %104 = vst [vmem:[#allocation2] sm:$0xff] %v103
        %s106 = sshllo.u32 0, 2
        %v108 = vld [vmem:[#allocation2] sm:%s106]
        %s109 = sshllo.u32 0, 2
        %110 = vst [vmem:[%s95] sm:%s109] %v108
        %s111 = sand.u32 %s11, 1
        %s112 = sand.u32 %s11, 1
        %s113 = smul.addr %s112, 2
        %s114 = scalar_lea.vmem [#allocation3], %s113
        %s115 = smul.addr %s15, 2
        %s116 = sadd.s32 %s16, %s115
        %s117 = smul.addr %s116, 2
        %s118 = scalar_lea.vmem %s1, %s117
        // Predicated region
        $region51: #{reverse.1} parent=49 // pred_check
          _
        $region52: #{reverse.1} parent=49 // pred_check_branch
          %120 = sbr.rel (0) target = $region54
        $region53: #{reverse.1} parent=49 // pred_region
          // Predicated region
          $region55: #{reverse.1} parent=53 // pred_check
            _
          $region56: #{reverse.1} parent=53 // pred_check_branch
            %122 = sbr.rel target = $region58
          $region57: #{reverse.1} parent=53 // pred_region
            // Predicated region
            $region70: #{reverse.1} parent=57 // pred_check
              _
            $region71: #{reverse.1} parent=57 // pred_check_branch
              %137 = sbr.rel (0) target = $region73
            $region72: #{reverse.1} parent=57 // pred_region
              loop: start=0, step=1, limit=1
              $region74: #{reverse.1} parent=72 // loop_pre_header
                _
              $region75: #{reverse.1} parent=72 // loop_header
                %s140 = sphi 0, %s144
                %p141 = scmp.ge.s32.totalorder %s140, 1
                %s145 = sphi %s114, %s114
                %s146 = sphi %s118, %s118
              $region76: #{reverse.1} parent=72 // loop_header_branch
                %143 = sbr.rel (%p141) target = $region80
              $region77: #{reverse.1} parent=72 // loop_body
                %v147 = vld [vmem:[%s145] sm:$0x3]
                %148 = vst [vmem:[%s146] sm:$0x3] %v147
              $region78: #{reverse.1} parent=72 // loop_footer
                %s144 = sadd.s32 1, %s140
              $region79: #{reverse.1} parent=72 // loop_footer_branch
                %139 = sbr.rel target = $region75
              $region80: #{reverse.1} parent=72 // loop_exit
                _
            $region73: #{reverse.1} parent=57 // pred_fallthru
              _
          $region58: #{reverse.1} parent=53 // pred_fallthru
            _
          // Predicated region
          $region59: #{reverse.1} parent=53 // pred_check
            _
          $region60: #{reverse.1} parent=53 // pred_check_branch
            %124 = sbr.rel (0) target = $region62
          $region61: #{reverse.1} parent=53 // pred_region
            loop: start=0, step=1, limit=1
            $region63: #{reverse.1} parent=61 // loop_pre_header
              _
            $region64: #{reverse.1} parent=61 // loop_header
              %s127 = sphi 0, %s131
              %p128 = scmp.ge.s32.totalorder %s127, 1
              %s132 = sphi %s114, %s114
              %s133 = sphi %s118, %s118
            $region65: #{reverse.1} parent=61 // loop_header_branch
              %130 = sbr.rel (%p128) target = $region69
            $region66: #{reverse.1} parent=61 // loop_body
              %v134 = vld [vmem:[%s132] sm:$0x3]
              %135 = vst [vmem:[%s133] sm:$0x3] %v134
            $region67: #{reverse.1} parent=61 // loop_footer
              %s131 = sadd.s32 1, %s127
            $region68: #{reverse.1} parent=61 // loop_footer_branch
              %126 = sbr.rel target = $region64
            $region69: #{reverse.1} parent=61 // loop_exit
              _
          $region62: #{reverse.1} parent=53 // pred_fallthru
            _
        $region54: #{reverse.1} parent=49 // pred_fallthru
          _
        %149 = vnop
      $region50: #{reverse.1} parent=5 // pred_fallthru
        _
      %p150 = scmp.le.s32.totalorder 2, %s6
      // Predicated region
      $region81: #{reverse.1} parent=5 // pred_check
        %p151 = pneg %p150
      $region82: #{reverse.1} parent=5 // pred_check_branch
        %153 = sbr.rel (%p151) target = $region84
      $region83: #{reverse.1} parent=5 // pred_region
        %s154 = ssub.s32 %s6, 2
        %s155 = sand.u32 %s12, 1
        %s156 = sand.u32 %s12, 1
        %s157 = smul.addr %s156, 2
        %s158 = scalar_lea.vmem [#allocation3], %s157
      $region84: #{reverse.1} parent=5 // pred_fallthru
        _
    $region6: #{reverse.1} parent=1 // loop_footer
      %s10 = sadd.s32 1, %s6
    $region7: #{reverse.1} parent=1 // loop_footer_branch
      %5 = sbr.rel target = $region3
    $region8: #{reverse.1} parent=1 // loop_exit
      _

</llo_original>
